<compile_context>
chip_gen: v5e
topology: v5e:2x2
jax: 0.10.0
libtpu: 0.0.40
codegen_flags: <defaults>
</compile_context>

<pallas_src>
import functools

import jax
import jax.numpy as jnp
from jax import lax
from jax.experimental import pallas as pl
from jax.experimental.pallas import tpu as pltpu


# ---------------------------------------------------------------------------
# Layout-padded VMEM footprints & per-generation budget
# ---------------------------------------------------------------------------
def _round_up(x, m):
    return (x + m - 1) // m * m


def _sublane(dtype):
    # native second-minor tile: 8 for f32, 16 for bf16, 32 for int8
    return max(8, 32 // jnp.dtype(dtype).itemsize)


def _padded_vmem_bytes(rows, cols, dtype):
    d = jnp.dtype(dtype)
    return (_round_up(max(int(rows), 1), _sublane(d))
            * _round_up(max(int(cols), 1), 128) * d.itemsize)


def _vmem_budget_bytes():
    cap = None
    try:
        cap = getattr(pltpu.get_tpu_info(), "vmem_capacity_bytes", None)
    except Exception:
        cap = None
    if not cap:
        cap = 64 * 1024 * 1024          # conservative default (v7x: 64 MiB / TC)
    # ~75% of physical per-TC VMEM: v7x -> 48 MiB, v5e/v6e -> 96 MiB.
    return int(min(cap * 3 // 4, 100 * 1024 * 1024))


# ---------------------------------------------------------------------------
# Kernel A (resident table, small n): vectorized one-hot + MXU matmul gather.
# ---------------------------------------------------------------------------
def _emb_gather_onehot_kernel(idx_ref, table_ref, out_ref):
    # idx_ref:   VMEM (TB, 1) int32   (index tile)
    # table_ref: VMEM (n, nz)         (resident: constant block index)
    # out_ref:   VMEM (TB, nz)
    tb = out_ref.shape[0]
    n = table_ref.shape[0]
    idx_col = idx_ref[...]                                       # (TB, 1)
    row_ids = lax.broadcasted_iota(jnp.int32, (tb, n), 1)        # (TB, n)
    onehot = (row_ids == idx_col).astype(table_ref.dtype)        # (TB, n)
    out_ref[...] = jnp.dot(
        onehot, table_ref[...], preferred_element_type=jnp.float32
    ).astype(out_ref.dtype)


# ---------------------------------------------------------------------------
# Kernel B (resident table, larger n): 8-row groups built in registers,
# aligned full-sublane-group stores.
# ---------------------------------------------------------------------------
def _emb_gather_rowloop_kernel(idx_ref, table_ref, out_ref):
    # idx_ref:   SMEM (B_pad,) int32  (scalar prefetch)
    # table_ref: VMEM (n, nz)         (resident)
    # out_ref:   VMEM (TB, nz)
    tb, nz = out_ref.shape
    base = pl.program_id(0) * tb
    # loop-invariant: hoisted so the broadcast_in_dim is emitted once
    sub_id = lax.broadcasted_iota(jnp.int32, (8, nz), 0)

    def body(g, carry):
        off = pl.multiple_of(g * 8, 8)
        grp = jnp.zeros((8, nz), out_ref.dtype)
        for j in range(8):                                       # unrolled
            row = table_ref[pl.ds(idx_ref[base + off + j], 1), :]   # (1, nz)
            grp = jnp.where(sub_id == j, row, grp)
        out_ref[pl.ds(off, 8), :] = grp                          # aligned 8-row store
        return carry

    lax.fori_loop(0, tb // 8, body, 0, unroll=False)


# ---------------------------------------------------------------------------
# Kernel C (huge tables): table stays in HBM; per-row DMAs with `nsem`
# outstanding copies, one aligned (TB, nz) store per grid step.
# ---------------------------------------------------------------------------
def _emb_gather_stream_kernel(idx_ref, table_hbm, out_ref, row_buf, sems, *, nsem):
    # idx_ref:   SMEM (B_pad,) int32  (scalar prefetch)
    # table_hbm: HBM  (n, nz)         (memory_space=pl.ANY)
    # out_ref:   VMEM (TB, nz)
    # row_buf:   VMEM (TB, nz) scratch
    # sems:      DMA semaphores (nsem,)
    tb = out_ref.shape[0]
    base = pl.program_id(0) * tb

    def start(j):
        row = idx_ref[base + j]
        pltpu.make_async_copy(
            table_hbm.at[pl.ds(row, 1), :],
            row_buf.at[pl.ds(j, 1), :],
            sems.at[j % nsem],
        ).start()

    def wait(j):
        # only the transfer size / semaphore slot matter for the wait
        pltpu.make_async_copy(
            table_hbm.at[pl.ds(0, 1), :],
            row_buf.at[pl.ds(j, 1), :],
            sems.at[j % nsem],
        ).wait()

    @pl.loop(0, min(nsem, tb))
    def _(j):
        start(j)

    @pl.loop(0, tb)
    def _(j):
        wait(j)

        @pl.when(j + nsem < tb)
        def _():
            start(j + nsem)

    out_ref[...] = row_buf[...]


# ---------------------------------------------------------------------------
# Wrapper
# ---------------------------------------------------------------------------
def netz_forward(idx, emb_weight, *, onehot_max_n=4096, force_streaming=False):
    """_netZ.forward: z = emb(idx).squeeze()."""
    idx = jnp.asarray(idx, jnp.int32)
    orig_shape = idx.shape
    n, nz = emb_weight.shape
    wdtype = emb_weight.dtype

    # PyTorch OOB embedding index is UB; clamp so the data-dependent DMA /
    # dynamic load never reads arbitrary memory.
    flat_idx = jnp.clip(idx.reshape(-1), 0, n - 1)
    b = flat_idx.shape[0]

    budget = _vmem_budget_bytes()
    # The BlockSpec pipeline allocates 2 buffers per input, including the
    # invariant table block (it is only *fetched* once per core).
    # TODO(synk): single-buffer the invariant table (pipeline_mode=pl.Buffered(1))
    # once buffer_count=1 is confirmed supported; doubles resident-eligible size.
    table_cost = 2 * _padded_vmem_bytes(n, nz, wdtype)
    slack = 2 * 1024 * 1024
    use_onehot = n <= onehot_max_n

    def tile_fits(tb):
        cost = table_cost + 2 * _padded_vmem_bytes(tb, nz, wdtype) + slack
        if use_onehot:
            n_lanes = _round_up(n, 128)
            cost += 2 * _padded_vmem_bytes(tb, 1, jnp.int32)   # index tiles
            cost += 3 * tb * n_lanes * 4                       # iota/mask/one-hot temps
            if tb * n_lanes * 4 > 4 * 1024 * 1024:             # keep working set small
                return False
        return cost <= budget

    # Largest tile (multiple of 8, up to 2048 rows) that fits the VMEM budget.
    tb = None
    if not force_streaming:
        cand = min(2048, pl.next_power_of_2(max(_round_up(b, 8), 8)))
        while cand >= 8:
            if tile_fits(cand):
                tb = cand
                break
            cand //= 2

    if tb is not None:
        # ------------------------- resident-table path -------------------------
        b_pad = _round_up(b, tb)
        idx_padded = jnp.pad(flat_idx, (0, b_pad - b))          # pad with row 0 (valid)
        grid = (b_pad // tb,)
        cparams = pltpu.CompilerParams(
            dimension_semantics=("parallel",),                  # 2 TCs on v7x
            vmem_limit_bytes=budget,
        )
        if use_onehot:
            out = pl.pallas_call(
                _emb_gather_onehot_kernel,
                out_shape=jax.ShapeDtypeStruct((b_pad, nz), wdtype),
                grid_spec=pltpu.PrefetchScalarGridSpec(
                    num_scalar_prefetch=0,
                    grid=grid,
                    in_specs=[
                        pl.BlockSpec((tb, 1), lambda i: (i, 0)),      # index tile (VMEM)
                        pl.BlockSpec((n, nz), lambda i: (0, 0)),      # resident table
                    ],
                    out_specs=pl.BlockSpec((tb, nz), lambda i: (i, 0)),
                ),
                compiler_params=cparams,
            )(idx_padded.reshape(b_pad, 1), emb_weight)
        else:
            # TODO(synk): for very large batches the scalar-prefetched index array
            # (SMEM pads to next_pow2(4*b_pad) bytes) may not fit SMEM; tile it.
            out = pl.pallas_call(
                _emb_gather_rowloop_kernel,
                out_shape=jax.ShapeDtypeStruct((b_pad, nz), wdtype),
                grid_spec=pltpu.PrefetchScalarGridSpec(
                    num_scalar_prefetch=1,
                    grid=grid,
                    in_specs=[
                        pl.BlockSpec((n, nz), lambda i, idx_r: (0, 0)),  # resident table
                    ],
                    out_specs=pl.BlockSpec((tb, nz), lambda i, idx_r: (i, 0)),
                ),
                compiler_params=cparams,
            )(idx_padded, emb_weight)
    else:
        # --------------------------- streaming path ----------------------------
        tbs = min(512, pl.next_power_of_2(max(_round_up(b, 8), 8)))
        nsem = min(16, tbs)                                     # outstanding row DMAs
        b_pad = _round_up(b, tbs)
        idx_padded = jnp.pad(flat_idx, (0, b_pad - b))
        out = pl.pallas_call(
            functools.partial(_emb_gather_stream_kernel, nsem=nsem),
            out_shape=jax.ShapeDtypeStruct((b_pad, nz), wdtype),
            grid_spec=pltpu.PrefetchScalarGridSpec(
                num_scalar_prefetch=1,
                grid=(b_pad // tbs,),
                in_specs=[
                    pl.BlockSpec(memory_space=pl.ANY),          # table stays in HBM
                ],
                out_specs=pl.BlockSpec((tbs, nz), lambda i, idx_r: (i, 0)),
                scratch_shapes=[
                    pltpu.VMEM((tbs, nz), wdtype),
                    pltpu.SemaphoreType.DMA((nsem,)),
                ],
            ),
            compiler_params=pltpu.CompilerParams(
                dimension_semantics=("parallel",),
            ),
        )(idx_padded, emb_weight)

    z = out[:b].reshape(orig_shape + (nz,))
    return jnp.squeeze(z)                                       # matches PyTorch .squeeze()


def init_netz_params(key, n, nz, dtype=jnp.float32):
    """nn.Embedding default init: weight ~ N(0, 1)."""
    return jax.random.normal(key, (n, nz), dtype)


if __name__ == "__main__":
    key = jax.random.PRNGKey(0)
    k_w, k_i = jax.random.split(key)

    n, nz, batch = 16, 32, 8
    emb_weight = init_netz_params(k_w, n, nz)
    idx = jax.random.randint(k_i, (batch,), 0, n, dtype=jnp.int32)

    z_ref = jnp.squeeze(emb_weight[idx])   # plain-JAX reference

    # Path A (default for small n): one-hot MXU resident gather.
    z1 = jax.block_until_ready(netz_forward(idx, emb_weight))
    assert z1.shape == (batch, nz), z1.shape
    assert jnp.allclose(z1, z_ref), "one-hot path mismatch vs reference"

    # Path B (forced): resident table, 8-row grouped loop gather.
    z2 = jax.block_until_ready(netz_forward(idx, emb_weight, onehot_max_n=0))
    assert jnp.allclose(z2, z_ref), "row-loop path mismatch vs reference"

    # Path C (forced): HBM streaming gather with overlapped row DMAs.
    z3 = jax.block_until_ready(netz_forward(idx, emb_weight, force_streaming=True))
    assert jnp.allclose(z3, z_ref), "streaming path mismatch vs reference"

    print("KERNEL_OK")
</pallas_src>

<mosaic_0001>
module attributes {stable_mosaic.version = 11 : i64} {
  func.func @_emb_gather_onehot_kernel(%arg0: i32, %arg1: memref<8x1xi32, #tpu.memory_space<vmem>>, %arg2: memref<16x32xf32, #tpu.memory_space<vmem>>, %arg3: memref<8x32xf32, #tpu.memory_space<vmem>>) attributes {dimension_semantics = [#tpu.dimension_semantics<parallel>], iteration_bounds = array<i64: 1>, scalar_prefetch = 0 : i64, scratch_operands = 0 : i64, tpu.core_type = #tpu.core_type<tc>, window_params = [{transform_indices = @transform_0, window_bounds = array<i64: 8, 1>}, {pipeline_mode = #tpu.pipeline_mode<synchronous>, transform_indices = @transform_1, window_bounds = array<i64: 16, 32>}, {transform_indices = @transform_2, window_bounds = array<i64: 8, 32>}]} {
    %c0 = arith.constant 0 : index
    %c0_0 = arith.constant 0 : index
    %0 = vector.load %arg1[%c0, %c0_0] : memref<8x1xi32, #tpu.memory_space<vmem>>, vector<8x1xi32>
    %1 = tpu.iota {dimensions = array<i32: 1>} : vector<8x16xi32>
    %2 = vector.broadcast %0 : vector<8x1xi32> to vector<8x16xi32>
    %3 = arith.cmpi eq, %1, %2 : vector<8x16xi32>
    %4 = arith.extui %3 : vector<8x16xi1> to vector<8x16xi32>
    %5 = arith.sitofp %4 : vector<8x16xi32> to vector<8x16xf32>
    %c0_1 = arith.constant 0 : index
    %c0_2 = arith.constant 0 : index
    %6 = vector.load %arg2[%c0_1, %c0_2] : memref<16x32xf32, #tpu.memory_space<vmem>>, vector<16x32xf32>
    %cst = arith.constant dense<0.000000e+00> : vector<8x32xf32>
    %7 = tpu.matmul %5, %6, %cst {dimension_numbers = #tpu.dot_dimension_numbers<[1], [0], [0], [1], [0, 0, 1, 1], [], []>} : vector<8x16xf32>, vector<16x32xf32>, vector<8x32xf32> -> vector<8x32xf32>
    %c0_3 = arith.constant 0 : index
    %c0_4 = arith.constant 0 : index
    %8 = vector.load %arg3[%c0_3, %c0_4] : memref<8x32xf32, #tpu.memory_space<vmem>>, vector<8x32xf32>
    tpu.vector_store %arg3[%c0_3, %c0_4], %7 {strides = array<i32>} : memref<8x32xf32, #tpu.memory_space<vmem>>, vector<8x32xf32>,
    return
  }
  func.func @transform_0(%arg0: i32) -> (i32, i32) {
    %c0_i32 = arith.constant 0 : i32
    %c0_i32_0 = arith.constant 0 : i32
    return %arg0, %c0_i32 : i32, i32
  }
  func.func @transform_1(%arg0: i32) -> (i32, i32) {
    %c0_i32 = arith.constant 0 : i32
    %c0_i32_0 = arith.constant 0 : i32
    %c0_i32_1 = arith.constant 0 : i32
    return %c0_i32, %c0_i32_0 : i32, i32
  }
  func.func @transform_2(%arg0: i32) -> (i32, i32) {
    %c0_i32 = arith.constant 0 : i32
    %c0_i32_0 = arith.constant 0 : i32
    return %arg0, %c0_i32 : i32, i32
  }
}

</mosaic_0001>

<llo_original>
// kernel: tpu_custom_call.1
$region0: #{tpu_custom_call.1}
  #allocation0 [shape = 'u32[]', space=smem, size = 0x4, offset = 0x4, fixed_abs, tag = 'smem constant byte address 0x4 - core index']
  #allocation1 [shape = 'u32[72,128]{1,0:T(1,128)}', space=vmem, size = 0x9000, scoped, tag = 'internal scratch']
  %s0 = inlined_call_operand.vmem [shape: s32[8,1], index: 0, kind: input, shape index: {}]
  %s1 = inlined_call_operand.hbm [shape: f32[16,32], index: 1, kind: input, shape index: {}]
  %s2 = inlined_call_operand.hbm [shape: f32[8,32], index: 2, kind: output, shape index: {}]
  %s3 = sld [smem:[#allocation0]]
  $region22: #{tpu_custom_call.1} parent=0
    _
  %s5 = ssub.s32 1, %s3
  %s6 = scalar_select 0, %s5, %s3
  $region1: #{tpu_custom_call.1} parent=0
    #allocation2 [shape = 'u8[8192]{0}', space=vmem, size = 0x2000, scoped, tag = 'input window, operand 1, single buffered']
    #allocation3 [shape = 's32[1]{0}', space=sflag, size = 0x4, scoped, tag = 'scoped memory for tpu_custom_call.1']
    #allocation4 [shape = 's32[1]{0}', space=sflag, size = 0x4, scoped, tag = 'scoped memory for tpu_custom_call.1']
    #allocation5 [shape = 'u8[4096]{0}', space=vmem, size = 0x1000, scoped, tag = 'output window, operand 0, single buffered']
    %7 = vsyncpa [#allocation3], 0
    %8 = vsyncpa [#allocation4], 0
    // Predicated region
    $region2: #{tpu_custom_call.1} parent=1 // pred_check
      _
    $region3: #{tpu_custom_call.1} parent=1 // pred_check_branch
      %10 = sbr.rel (0) target = $region5
    $region4: #{tpu_custom_call.1} parent=1 // pred_region
      _
    $region5: #{tpu_custom_call.1} parent=1 // pred_fallthru
      _
    // Predicated region
    $region6: #{tpu_custom_call.1} parent=1 // pred_check
      _
    $region7: #{tpu_custom_call.1} parent=1 // pred_check_branch
      %12 = sbr.rel (0) target = $region9
    $region8: #{tpu_custom_call.1} parent=1 // pred_region
      %14 = vsyncadd [#allocation3], 0
      %s15 = sshll.u32 %s1, 4
      %s16 = int_to_ptr.hbm [resolvable:$true] %s15
      %s17 = sshll.u32 [#allocation2], 4
      %s18 = int_to_ptr.vmem [resolvable:$true] %s17
      %23 = dma.hbm_to_vmem [thread:$0]  %s16, 256, %s18, [#allocation3], 128, 128, 8
    $region9: #{tpu_custom_call.1} parent=1 // pred_fallthru
      _
    // Predicated region
    $region10: #{tpu_custom_call.1} parent=1 // pred_check
      _
    $region11: #{tpu_custom_call.1} parent=1 // pred_check_branch
      %25 = sbr.rel (0) target = $region13
    $region12: #{tpu_custom_call.1} parent=1 // pred_region
      %27 = dma.done [#allocation3], 256
    $region13: #{tpu_custom_call.1} parent=1 // pred_fallthru
      _
    %v28 = vld [vmem:[%s0] sm:$0xff]
    %v29 = vlaneseq
    %v30 = vand.u32 %v29, 127
    %31 = vset.pattern.permute.xlu0 0
    %32 = vperm.xlu0 %31, %v28
    %v33 = vpop.permute.xlu0 %32
    %vm34 = vcmp.eq.s32.totalorder %v30, %v33
    %v35 = vsel %vm34, 1, 0
    %v36 = vcvt.s32.f32 %v35
    %v37 = vld [vmem:[#allocation2] sm:$0xff]
    %v38 = vld [vmem:[#allocation2 + $0x8] sm:$0xff]
    %vm39 = vcmask 130048
    %v41 = vsel %vm39, %v36, 0
    %43 = vmatpush.msra.mxu0 0.0
    %44 = vmatpush.msra.mxu0 0.0
    %45 = vmatpush.msra.mxu0 0.0
    %46 = vmatpush.msra.mxu0 0.0
    %47 = vmatpush.msra.mxu0 0.0
    %48 = vmatpush.msra.mxu0 0.0
    %49 = vmatpush.msra.mxu0 0.0
    %50 = vmatpush.msra.mxu0 0.0
    %51 = vmatpush.msra.mxu0 0.0
    %52 = vmatpush.msra.mxu0 0.0
    %53 = vmatpush.msra.mxu0 0.0
    %54 = vmatpush.msra.mxu0 0.0
    %55 = vmatpush.msra.mxu0 0.0
    %56 = vmatpush.msra.mxu0 0.0
    %57 = vmatpush.msra.mxu0 %v38
    %58 = vmatpush.msra.mxu0 %v37
    %59 = vmatmul.f32.gmra.mxu0 %v41
    %v60 = vpop.f32.mrf.mxu0
    %v61 = vadd.f32 0.0, %v60
    %62 = vdwg.mxu0
    %vm63 = vcmask 261120
    %64 = vst.msk [vmem:[#allocation5] sm:$0xff] %vm63, %v61
    // Predicated region
    $region14: #{tpu_custom_call.1} parent=1 // pred_check
      _
    $region15: #{tpu_custom_call.1} parent=1 // pred_check_branch
      %66 = sbr.rel (0) target = $region17
    $region16: #{tpu_custom_call.1} parent=1 // pred_region
      %68 = vsyncadd [#allocation4], 0
      %s70 = sshll.u32 [#allocation5], 4
      %s71 = int_to_ptr.vmem [resolvable:$true] %s70
      %s72 = sshll.u32 %s2, 4
      %s73 = int_to_ptr.hbm [resolvable:$true] %s72
      %75 = dma.vmem_to_hbm [thread:$0]  %s71, 128, %s73, [#allocation4]
    $region17: #{tpu_custom_call.1} parent=1 // pred_fallthru
      _
    // Predicated region
    $region18: #{tpu_custom_call.1} parent=1 // pred_check
      _
    $region19: #{tpu_custom_call.1} parent=1 // pred_check_branch
      %77 = sbr.rel (0) target = $region21
    $region20: #{tpu_custom_call.1} parent=1 // pred_region
      %79 = dma.done [#allocation4], 128
    $region21: #{tpu_custom_call.1} parent=1 // pred_fallthru
      _
    %80 = vsyncpa [#allocation3], 1
    %81 = vsyncpa [#allocation4], 1

</llo_original>
